<compile_context>
chip_gen: v7x
topology: tpu7x:2x2x1
jax: 0.10.0
libtpu: 0.0.40
codegen_flags: <defaults>
</compile_context>

<pallas_src>
import jax
import jax.numpy as jnp
from jax.experimental import pallas as pl
from jax.experimental.pallas import tpu as pltpu


def _round_up(x, m):
    return (x + m - 1) // m * m


def relation_kernel(x1_ref, x2_ref, w1a_ref, w1b_ref, b1_ref,
                    w2_ref, b2_ref, o_ref):
    # Hidden layer: cat([x1, x2], -1) @ W1^T + b1 == x1 @ W1a + x2 @ W1b + b1
    h = jnp.dot(x1_ref[...], w1a_ref[...], preferred_element_type=jnp.float32)
    h = h + jnp.dot(x2_ref[...], w1b_ref[...], preferred_element_type=jnp.float32)
    h = jnp.maximum(h + b1_ref[...], 0.0)                      # ReLU (VPU)
    # Output layer (H -> 1): VPU multiply + lane reduce; scalar bias from SMEM.
    s = jnp.sum(h * w2_ref[...], axis=-1, keepdims=True) + b2_ref[0, 0]
    o_ref[...] = jax.nn.sigmoid(s).astype(o_ref.dtype)


def relation_forward(x1, x2, params, *, tb=1024):
    """x1, x2: [B, H] float32. Returns relation_score [B, 1] float32."""
    w1a, w1b, b1, w2_row, b2 = params
    B, H = x1.shape
    tb = min(tb, _round_up(B, 8))          # batch tile (multiple of 8)
    grid = (pl.cdiv(B, tb),)

    # VMEM budget: double-buffered x1/x2/out tiles + resident weights/biases.
    vmem_bytes = 4 * (2 * 2 * tb * H       # x1, x2 (2 buffers each)
                      + 2 * H * H          # w1a, w1b (resident)
                      + 2 * H              # b1, w2_row
                      + 2 * tb)            # output tiles (2 buffers)
    vmem_limit = max(16 << 20, min(48 << 20, 2 * vmem_bytes + (4 << 20)))

    cost = pl.CostEstimate(
        flops=2 * B * (2 * H * H + H),
        transcendentals=B,                                  # one exp / sigmoid
        bytes_accessed=4 * (2 * B * H + 2 * H * H + 2 * H + 1 + B),
    )

    return pl.pallas_call(
        relation_kernel,
        out_shape=jax.ShapeDtypeStruct((B, 1), jnp.float32),
        grid=grid,
        in_specs=[
            pl.BlockSpec((tb, H), lambda i: (i, 0)),        # x1 (streamed)
            pl.BlockSpec((tb, H), lambda i: (i, 0)),        # x2 (streamed)
            pl.BlockSpec((H, H), lambda i: (0, 0)),         # w1a (resident)
            pl.BlockSpec((H, H), lambda i: (0, 0)),         # w1b (resident)
            pl.BlockSpec((1, H), lambda i: (0, 0)),         # b1 (resident)
            pl.BlockSpec((1, H), lambda i: (0, 0)),         # w2 row (resident)
            pl.BlockSpec(memory_space=pltpu.MemorySpace.SMEM),  # b2 scalar
        ],
        out_specs=pl.BlockSpec((tb, 1), lambda i: (i, 0)),
        compiler_params=pltpu.CompilerParams(
            dimension_semantics=("parallel",),
            vmem_limit_bytes=int(vmem_limit),
        ),
        cost_estimate=cost,
    )(x1, x2, w1a, w1b, b1, w2_row, b2)


def init_params(key, hidden_size):
    """Deterministic init mirroring nn.Linear default U(-1/sqrt(fan_in), ...).

    relation_layer = Linear(2H, H) -> ReLU -> Linear(H, 1) -> Sigmoid
    Weights stored as [in, out]; W1 split into x1-half / x2-half; W2 as a row.
    """
    H = hidden_size
    k1, k2, k3, k4 = jax.random.split(key, 4)
    bnd1 = 1.0 / jnp.sqrt(2.0 * H)
    w1 = jax.random.uniform(k1, (2 * H, H), jnp.float32, -bnd1, bnd1)
    b1 = jax.random.uniform(k2, (1, H), jnp.float32, -bnd1, bnd1)
    bnd2 = 1.0 / jnp.sqrt(float(H))
    w2 = jax.random.uniform(k3, (H, 1), jnp.float32, -bnd2, bnd2)
    b2 = jax.random.uniform(k4, (1, 1), jnp.float32, -bnd2, bnd2)
    w1a, w1b = w1[:H, :], w1[H:, :]
    w2_row = w2.T                                            # [1, H]
    return w1a, w1b, b1, w2_row, b2


def reference_forward(x1, x2, params):
    w1a, w1b, b1, w2_row, b2 = params
    combined = jnp.concatenate([x1, x2], axis=-1)
    w1 = jnp.concatenate([w1a, w1b], axis=0)
    h = jnp.maximum(combined @ w1 + b1, 0.0)
    return jax.nn.sigmoid(h @ w2_row.T + b2)


if __name__ == "__main__":
    B, H = 16, 32
    TB = 8                      # 2 grid steps -> exercises the tiled pipeline
    key = jax.random.PRNGKey(0)
    kx1, kx2, kp = jax.random.split(key, 3)
    x1 = jax.random.normal(kx1, (B, H), jnp.float32)
    x2 = jax.random.normal(kx2, (B, H), jnp.float32)
    params = init_params(kp, H)

    out = relation_forward(x1, x2, params, tb=TB)
    out = jax.block_until_ready(out)

    ref = reference_forward(x1, x2, params)
    assert out.shape == (B, 1), out.shape
    assert jnp.allclose(out, ref, atol=1e-5, rtol=1e-5), (out, ref)
    print("KERNEL_OK")
</pallas_src>

<mosaic_0001>
module attributes {stable_mosaic.version = 11 : i64} {
  func.func @relation_kernel(%arg0: i32, %arg1: memref<8x32xf32, #tpu.memory_space<vmem>>, %arg2: memref<8x32xf32, #tpu.memory_space<vmem>>, %arg3: memref<32x32xf32, #tpu.memory_space<vmem>>, %arg4: memref<32x32xf32, #tpu.memory_space<vmem>>, %arg5: memref<1x32xf32, #tpu.memory_space<vmem>>, %arg6: memref<1x32xf32, #tpu.memory_space<vmem>>, %arg7: memref<1x1xf32, #tpu.memory_space<smem>>, %arg8: memref<8x1xf32, #tpu.memory_space<vmem>>) attributes {dimension_semantics = [#tpu.dimension_semantics<parallel>], iteration_bounds = array<i64: 2>, scalar_prefetch = 0 : i64, scratch_operands = 0 : i64, tpu.core_type = #tpu.core_type<tc>, window_params = [{transform_indices = @transform_0, window_bounds = array<i64: 8, 32>}, {transform_indices = @transform_1, window_bounds = array<i64: 8, 32>}, {pipeline_mode = #tpu.pipeline_mode<synchronous>, transform_indices = @transform_2, window_bounds = array<i64: 32, 32>}, {pipeline_mode = #tpu.pipeline_mode<synchronous>, transform_indices = @transform_3, window_bounds = array<i64: 32, 32>}, {pipeline_mode = #tpu.pipeline_mode<synchronous>, transform_indices = @transform_4, window_bounds = array<i64: 1, 32>}, {pipeline_mode = #tpu.pipeline_mode<synchronous>, transform_indices = @transform_5, window_bounds = array<i64: 1, 32>}, {transform_indices = @transform_6, window_bounds = array<i64: 1, 1>}, {transform_indices = @transform_7, window_bounds = array<i64: 8, 1>}]} {
    %c0 = arith.constant 0 : index
    %c0_0 = arith.constant 0 : index
    %0 = vector.load %arg1[%c0, %c0_0] : memref<8x32xf32, #tpu.memory_space<vmem>>, vector<8x32xf32>
    %c0_1 = arith.constant 0 : index
    %c0_2 = arith.constant 0 : index
    %1 = vector.load %arg3[%c0_1, %c0_2] : memref<32x32xf32, #tpu.memory_space<vmem>>, vector<32x32xf32>
    %cst = arith.constant dense<0.000000e+00> : vector<8x32xf32>
    %2 = tpu.matmul %0, %1, %cst {dimension_numbers = #tpu.dot_dimension_numbers<[1], [0], [0], [1], [0, 0, 1, 1], [], []>} : vector<8x32xf32>, vector<32x32xf32>, vector<8x32xf32> -> vector<8x32xf32>
    %c0_3 = arith.constant 0 : index
    %c0_4 = arith.constant 0 : index
    %3 = vector.load %arg2[%c0_3, %c0_4] : memref<8x32xf32, #tpu.memory_space<vmem>>, vector<8x32xf32>
    %c0_5 = arith.constant 0 : index
    %c0_6 = arith.constant 0 : index
    %4 = vector.load %arg4[%c0_5, %c0_6] : memref<32x32xf32, #tpu.memory_space<vmem>>, vector<32x32xf32>
    %cst_7 = arith.constant dense<0.000000e+00> : vector<8x32xf32>
    %5 = tpu.matmul %3, %4, %cst_7 {dimension_numbers = #tpu.dot_dimension_numbers<[1], [0], [0], [1], [0, 0, 1, 1], [], []>} : vector<8x32xf32>, vector<32x32xf32>, vector<8x32xf32> -> vector<8x32xf32>
    %6 = arith.addf %2, %5 : vector<8x32xf32>
    %c0_8 = arith.constant 0 : index
    %c0_9 = arith.constant 0 : index
    %7 = vector.load %arg5[%c0_8, %c0_9] : memref<1x32xf32, #tpu.memory_space<vmem>>, vector<1x32xf32>
    %8 = vector.broadcast %7 : vector<1x32xf32> to vector<8x32xf32>
    %9 = arith.addf %6, %8 : vector<8x32xf32>
    %cst_10 = arith.constant 0.000000e+00 : f32
    %10 = vector.broadcast %cst_10 : f32 to vector<8x32xf32>
    %11 = arith.maximumf %9, %10 : vector<8x32xf32>
    %c0_11 = arith.constant 0 : index
    %c0_12 = arith.constant 0 : index
    %12 = vector.load %arg6[%c0_11, %c0_12] : memref<1x32xf32, #tpu.memory_space<vmem>>, vector<1x32xf32>
    %13 = vector.broadcast %12 : vector<1x32xf32> to vector<8x32xf32>
    %14 = arith.mulf %11, %13 : vector<8x32xf32>
    %cst_13 = arith.constant dense<0.000000e+00> : vector<8xf32>
    %15 = vector.multi_reduction <add>, %14, %cst_13 [1] : vector<8x32xf32> to vector<8xf32>
    %16 = vector.shape_cast %15 : vector<8xf32> to vector<8x1xf32>
    %c0_14 = arith.constant 0 : index
    %c0_15 = arith.constant 0 : index
    %17 = memref.load %arg7[%c0_14, %c0_15] : memref<1x1xf32, #tpu.memory_space<smem>>
    %18 = vector.broadcast %17 : f32 to vector<8x1xf32>
    %19 = arith.addf %16, %18 : vector<8x1xf32>
    %20 = arith.negf %19 : vector<8x1xf32>
    %21 = math.exp %20 : vector<8x1xf32>
    %cst_16 = arith.constant 1.000000e+00 : f32
    %22 = vector.broadcast %cst_16 : f32 to vector<8x1xf32>
    %23 = arith.addf %22, %21 : vector<8x1xf32>
    %24 = arith.divf %22, %23 : vector<8x1xf32>
    %c0_17 = arith.constant 0 : index
    %c0_18 = arith.constant 0 : index
    %25 = vector.load %arg8[%c0_17, %c0_18] : memref<8x1xf32, #tpu.memory_space<vmem>>, vector<8x1xf32>
    tpu.vector_store %arg8[%c0_17, %c0_18], %24 {strides = array<i32>} : memref<8x1xf32, #tpu.memory_space<vmem>>, vector<8x1xf32>,
    return
  }
  func.func @transform_0(%arg0: i32) -> (i32, i32) {
    %c0_i32 = arith.constant 0 : i32
    %c0_i32_0 = arith.constant 0 : i32
    return %arg0, %c0_i32 : i32, i32
  }
  func.func @transform_1(%arg0: i32) -> (i32, i32) {
    %c0_i32 = arith.constant 0 : i32
    %c0_i32_0 = arith.constant 0 : i32
    return %arg0, %c0_i32 : i32, i32
  }
  func.func @transform_2(%arg0: i32) -> (i32, i32) {
    %c0_i32 = arith.constant 0 : i32
    %c0_i32_0 = arith.constant 0 : i32
    %c0_i32_1 = arith.constant 0 : i32
    return %c0_i32, %c0_i32_0 : i32, i32
  }
  func.func @transform_3(%arg0: i32) -> (i32, i32) {
    %c0_i32 = arith.constant 0 : i32
    %c0_i32_0 = arith.constant 0 : i32
    %c0_i32_1 = arith.constant 0 : i32
    return %c0_i32, %c0_i32_0 : i32, i32
  }
  func.func @transform_4(%arg0: i32) -> (i32, i32) {
    %c0_i32 = arith.constant 0 : i32
    %c0_i32_0 = arith.constant 0 : i32
    %c0_i32_1 = arith.constant 0 : i32
    return %c0_i32, %c0_i32_0 : i32, i32
  }
  func.func @transform_5(%arg0: i32) -> (i32, i32) {
    %c0_i32 = arith.constant 0 : i32
    %c0_i32_0 = arith.constant 0 : i32
    %c0_i32_1 = arith.constant 0 : i32
    return %c0_i32, %c0_i32_0 : i32, i32
  }
  func.func @transform_6(%arg0: i32) -> (i32, i32) {
    %c0_i32 = arith.constant 0 : i32
    %c0_i32_0 = arith.constant 0 : i32
    %c0_i32_1 = arith.constant 0 : i32
    return %c0_i32, %c0_i32_0 : i32, i32
  }
  func.func @transform_7(%arg0: i32) -> (i32, i32) {
    %c0_i32 = arith.constant 0 : i32
    %c0_i32_0 = arith.constant 0 : i32
    return %arg0, %c0_i32 : i32, i32
  }
}

</mosaic_0001>

<llo_original>
// kernel: tpu_custom_call.1
$region0: #{tpu_custom_call.1}
  #allocation0 [shape = 'u32[]', space=smem, size = 0x4, offset = 0x4, fixed_abs, tag = 'smem constant byte address 0x4 - core index']
  #allocation1 [shape = 'u32[144,128]{1,0:T(1,128)}', space=vmem, size = 0x12000, scoped, tag = 'internal scratch']
  #allocation2 [shape = 'f32[1,1]{1,0:T(1,128)S(6)}', space=smem, size = 0x200, scoped, tag = 'scoped memory for tpu_custom_call.1']
  %s0 = inlined_call_operand.hbm [shape: f32[16,32], index: 0, kind: input, shape index: {}]
  %s1 = inlined_call_operand.hbm [shape: f32[16,32], index: 1, kind: input, shape index: {}]
  %s2 = inlined_call_operand.hbm [shape: f32[32,32], index: 2, kind: input, shape index: {}]
  %s3 = inlined_call_operand.hbm [shape: f32[32,32], index: 3, kind: input, shape index: {}]
  %s4 = inlined_call_operand.vmem [shape: f32[1,32], index: 4, kind: input, shape index: {}]
  %s5 = inlined_call_operand.vmem [shape: f32[1,32], index: 5, kind: input, shape index: {}]
  %s6 = inlined_call_operand.<no memory space> [shape: f32[1,1], index: 6, kind: input, shape index: {}]
  %s7 = inlined_call_operand.vmem [shape: f32[16,1], index: 7, kind: output, shape index: {}]
  %s8 = sld [smem:[#allocation0]]
  $region77: #{tpu_custom_call.1} parent=0
    _
  %s10 = ssub.s32 1, %s8
  %s11 = scalar_select 0, %s10, %s8
  %12 = sst [smem:[#allocation2]] %s6
  $region1: #{tpu_custom_call.1} parent=0
    #allocation3 [shape = 'u8[8192]{0}', space=vmem, size = 0x2000, scoped, tag = 'input window, operand 0']
    #allocation4 [shape = 's32[2]{0}', space=sflag, size = 0x8, scoped, tag = 'scoped memory for tpu_custom_call.1']
    #allocation5 [shape = 'u8[8192]{0}', space=vmem, size = 0x2000, scoped, tag = 'input window, operand 1']
    #allocation6 [shape = 's32[2]{0}', space=sflag, size = 0x8, scoped, tag = 'scoped memory for tpu_custom_call.1']
    #allocation7 [shape = 'u8[16384]{0}', space=vmem, size = 0x4000, scoped, tag = 'input window, operand 2, single buffered']
    #allocation8 [shape = 'u8[16384]{0}', space=vmem, size = 0x4000, scoped, tag = 'input window, operand 3, single buffered']
    #allocation9 [shape = 's32[1]{0}', space=sflag, size = 0x4, scoped, tag = 'scoped memory for tpu_custom_call.1']
    %13 = vsyncpa [#allocation4], 0
    %s14 = scalar_lea.sflag [#allocation4], 1
    %15 = vsyncpa %s14, 0
    %16 = vsyncpa [#allocation6], 0
    %s17 = scalar_lea.sflag [#allocation6], 1
    %18 = vsyncpa %s17, 0
    %19 = vsyncpa [#allocation9], 0
    loop: start=0, step=1, limit=4
    $region2: #{tpu_custom_call.1} parent=1 // loop_pre_header
      _
    $region3: #{tpu_custom_call.1} parent=1 // loop_header
      %s21 = sphi 0, %s25
      %p22 = scmp.ge.s32.totalorder %s21, 4
      %s31 = sphi 0, %s33
      %s34 = sphi 0, %s31
      %s35 = sphi 0, %s34
      %s51 = sphi 0, %s35
      %s57 = sphi 0, %s59
      %s60 = sphi 0, %s57
      %s61 = sphi 0, %s60
      %s77 = sphi 0, %s61
      %s81 = sphi 0, %s81
      %s83 = sphi 0, %s81
      %s84 = sphi 0, %s83
      %s98 = sphi 0, %s84
      %s102 = sphi 0, %s102
      %s104 = sphi 0, %s102
      %s105 = sphi 0, %s104
      %s119 = sphi 0, %s105
      %s123 = sphi 0, %s123
      %s125 = sphi 0, %s123
      %s126 = sphi 0, %s125
      %s140 = sphi 0, %s126
      %s144 = sphi 0, %s144
      %s146 = sphi 0, %s144
      %s147 = sphi 0, %s146
      %s161 = sphi 0, %s147
      %s165 = sphi 0, %s165
      %s167 = sphi 0, %s165
      %s168 = sphi 0, %s167
      %s182 = sphi 0, %s168
      %s188 = sphi 0, %s190
      %s191 = sphi 0, %s188
      %s192 = sphi 0, %s191
      %s208 = sphi 0, %s192
    $region4: #{tpu_custom_call.1} parent=1 // loop_header_branch
      %24 = sbr.rel (%p22) target = $region8
    $region5: #{tpu_custom_call.1} parent=1 // loop_body
      %s26 = ssub.s32 %s21, 1
      %s27 = ssub.s32 %s21, 2
      %s28 = sadd.s32 %s21, 1
      %s29 = ssub.s32 %s21, %s28
      %p30 = scmp.eq.s32.totalorder %s29, 0
      %s32 = sadd.s32 %s31, 1
      %s33 = scalar_select %p30, %s31, %s32
      %p36 = pneg %p30
      %p37 = scmp.eq.s32.totalorder %s21, 1
      %p38 = por %p36, %p37
      %p39 = scmp.ne.s32.totalorder %s31, %s34
      %p40 = scmp.eq.s32.totalorder %s21, 0
      %p41 = por %p39, %p40
      %p42 = scmp.ne.s32.totalorder %s31, %s34
      %p43 = scmp.eq.s32.totalorder %s26, 1
      %p44 = por %p42, %p43
      %p45 = scmp.ne.s32.totalorder %s34, %s35
      %p46 = scmp.eq.s32.totalorder %s26, 0
      %p47 = por %p45, %p46
      %p48 = scmp.ne.s32.totalorder %s34, %s35
      %p49 = scmp.eq.s32.totalorder %s27, 1
      %p50 = por %p48, %p49
      %p52 = scmp.ne.s32.totalorder %s35, %s51
      %p53 = scmp.eq.s32.totalorder %s27, 0
      %p54 = por %p52, %p53
      %s55 = ssub.s32 %s21, %s28
      %p56 = scmp.eq.s32.totalorder %s55, 0
      %s58 = sadd.s32 %s57, 1
      %s59 = scalar_select %p56, %s57, %s58
      %p62 = pneg %p56
      %p63 = scmp.eq.s32.totalorder %s21, 1
      %p64 = por %p62, %p63
      %p65 = scmp.ne.s32.totalorder %s57, %s60
      %p66 = scmp.eq.s32.totalorder %s21, 0
      %p67 = por %p65, %p66
      %p68 = scmp.ne.s32.totalorder %s57, %s60
      %p69 = scmp.eq.s32.totalorder %s26, 1
      %p70 = por %p68, %p69
      %p71 = scmp.ne.s32.totalorder %s60, %s61
      %p72 = scmp.eq.s32.totalorder %s26, 0
      %p73 = por %p71, %p72
      %p74 = scmp.ne.s32.totalorder %s60, %s61
      %p75 = scmp.eq.s32.totalorder %s27, 1
      %p76 = por %p74, %p75
      %p78 = scmp.ne.s32.totalorder %s61, %s77
      %p79 = scmp.eq.s32.totalorder %s27, 0
      %p80 = por %p78, %p79
      %s82 = sadd.s32 %s81, 1
      %p85 = scmp.eq.s32.totalorder %s21, 1
      %p86 = scmp.ne.s32.totalorder %s81, %s83
      %p87 = scmp.eq.s32.totalorder %s21, 0
      %p88 = por %p86, %p87
      %p89 = scmp.ne.s32.totalorder %s81, %s83
      %p90 = scmp.eq.s32.totalorder %s26, 1
      %p91 = por %p89, %p90
      %p92 = scmp.ne.s32.totalorder %s83, %s84
      %p93 = scmp.eq.s32.totalorder %s26, 0
      %p94 = por %p92, %p93
      %p95 = scmp.ne.s32.totalorder %s83, %s84
      %p96 = scmp.eq.s32.totalorder %s27, 1
      %p97 = por %p95, %p96
      %p99 = scmp.ne.s32.totalorder %s84, %s98
      %p100 = scmp.eq.s32.totalorder %s27, 0
      %p101 = por %p99, %p100
      %s103 = sadd.s32 %s102, 1
      %p106 = scmp.eq.s32.totalorder %s21, 1
      %p107 = scmp.ne.s32.totalorder %s102, %s104
      %p108 = scmp.eq.s32.totalorder %s21, 0
      %p109 = por %p107, %p108
      %p110 = scmp.ne.s32.totalorder %s102, %s104
      %p111 = scmp.eq.s32.totalorder %s26, 1
      %p112 = por %p110, %p111
      %p113 = scmp.ne.s32.totalorder %s104, %s105
      %p114 = scmp.eq.s32.totalorder %s26, 0
      %p115 = por %p113, %p114
      %p116 = scmp.ne.s32.totalorder %s104, %s105
      %p117 = scmp.eq.s32.totalorder %s27, 1
      %p118 = por %p116, %p117
      %p120 = scmp.ne.s32.totalorder %s105, %s119
      %p121 = scmp.eq.s32.totalorder %s27, 0
      %p122 = por %p120, %p121
      %s124 = sadd.s32 %s123, 1
      %p127 = scmp.eq.s32.totalorder %s21, 1
      %p128 = scmp.ne.s32.totalorder %s123, %s125
      %p129 = scmp.eq.s32.totalorder %s21, 0
      %p130 = por %p128, %p129
      %p131 = scmp.ne.s32.totalorder %s123, %s125
      %p132 = scmp.eq.s32.totalorder %s26, 1
      %p133 = por %p131, %p132
      %p134 = scmp.ne.s32.totalorder %s125, %s126
      %p135 = scmp.eq.s32.totalorder %s26, 0
      %p136 = por %p134, %p135
      %p137 = scmp.ne.s32.totalorder %s125, %s126
      %p138 = scmp.eq.s32.totalorder %s27, 1
      %p139 = por %p137, %p138
      %p141 = scmp.ne.s32.totalorder %s126, %s140
      %p142 = scmp.eq.s32.totalorder %s27, 0
      %p143 = por %p141, %p142
      %s145 = sadd.s32 %s144, 1
      %p148 = scmp.eq.s32.totalorder %s21, 1
      %p149 = scmp.ne.s32.totalorder %s144, %s146
      %p150 = scmp.eq.s32.totalorder %s21, 0
      %p151 = por %p149, %p150
      %p152 = scmp.ne.s32.totalorder %s144, %s146
      %p153 = scmp.eq.s32.totalorder %s26, 1
      %p154 = por %p152, %p153
      %p155 = scmp.ne.s32.totalorder %s146, %s147
      %p156 = scmp.eq.s32.totalorder %s26, 0
      %p157 = por %p155, %p156
      %p158 = scmp.ne.s32.totalorder %s146, %s147
      %p159 = scmp.eq.s32.totalorder %s27, 1
      %p160 = por %p158, %p159
      %p162 = scmp.ne.s32.totalorder %s147, %s161
      %p163 = scmp.eq.s32.totalorder %s27, 0
      %p164 = por %p162, %p163
      %s166 = sadd.s32 %s165, 1
      %p169 = scmp.eq.s32.totalorder %s21, 1
      %p170 = scmp.ne.s32.totalorder %s165, %s167
      %p171 = scmp.eq.s32.totalorder %s21, 0
      %p172 = por %p170, %p171
      %p173 = scmp.ne.s32.totalorder %s165, %s167
      %p174 = scmp.eq.s32.totalorder %s26, 1
      %p175 = por %p173, %p174
      %p176 = scmp.ne.s32.totalorder %s167, %s168
      %p177 = scmp.eq.s32.totalorder %s26, 0
      %p178 = por %p176, %p177
      %p179 = scmp.ne.s32.totalorder %s167, %s168
      %p180 = scmp.eq.s32.totalorder %s27, 1
      %p181 = por %p179, %p180
      %p183 = scmp.ne.s32.totalorder %s168, %s182
      %p184 = scmp.eq.s32.totalorder %s27, 0
      %p185 = por %p183, %p184
      %s186 = ssub.s32 %s21, %s28
      %p187 = scmp.eq.s32.totalorder %s186, 0
      %s189 = sadd.s32 %s188, 1
      %s190 = scalar_select %p187, %s188, %s189
      %p193 = pneg %p187
      %p194 = scmp.eq.s32.totalorder %s21, 1
      %p195 = por %p193, %p194
      %p196 = scmp.ne.s32.totalorder %s188, %s191
      %p197 = scmp.eq.s32.totalorder %s21, 0
      %p198 = por %p196, %p197
      %p199 = scmp.ne.s32.totalorder %s188, %s191
      %p200 = scmp.eq.s32.totalorder %s26, 1
      %p201 = por %p199, %p200
      %p202 = scmp.ne.s32.totalorder %s191, %s192
      %p203 = scmp.eq.s32.totalorder %s26, 0
      %p204 = por %p202, %p203
      %p205 = scmp.ne.s32.totalorder %s191, %s192
      %p206 = scmp.eq.s32.totalorder %s27, 1
      %p207 = por %p205, %p206
      %p209 = scmp.ne.s32.totalorder %s192, %s208
      %p210 = scmp.eq.s32.totalorder %s27, 0
      %p211 = por %p209, %p210
      %p212 = scmp.le.s32.totalorder 1, %s21
      %p213 = scmp.lt.s32.totalorder %s21, 3
      %p214 = pnand %p212, %p213
      %p215 = pneg %p214
      // Predicated region
      $region9: #{tpu_custom_call.1} parent=5 // pred_check
        _
      $region10: #{tpu_custom_call.1} parent=5 // pred_check_branch
        %217 = sbr.rel (%p214) target = $region12
      $region11: #{tpu_custom_call.1} parent=5 // pred_region
        %s218 = ssub.s32 %s21, 1
        // Predicated region
        $region13: #{tpu_custom_call.1} parent=11 // pred_check
          %p219 = pneg %p94
        $region14: #{tpu_custom_call.1} parent=11 // pred_check_branch
          %221 = sbr.rel (%p219) target = $region16
        $region15: #{tpu_custom_call.1} parent=11 // pred_region
          %s223 = ssub.s32 512, 512
          %224 = vsyncadd [#allocation6], %s223
          %s225 = sshll.u32 [#allocation7], 4
          %s226 = int_to_ptr.vmem [resolvable:$true] %s225
          %231 = dma.hbm_to_vmem [thread:$0]  %s2, 512, %s226, [#allocation6], 128, 128, 8
        $region16: #{tpu_custom_call.1} parent=11 // pred_fallthru
          _
        // Predicated region
        $region17: #{tpu_custom_call.1} parent=11 // pred_check
          %p232 = pneg %p115
        $region18: #{tpu_custom_call.1} parent=11 // pred_check_branch
          %234 = sbr.rel (%p232) target = $region20
        $region19: #{tpu_custom_call.1} parent=11 // pred_region
          %s236 = ssub.s32 512, 512
          %237 = vsyncadd [#allocation9], %s236
          %s238 = sshll.u32 [#allocation8], 4
          %s239 = int_to_ptr.vmem [resolvable:$true] %s238
          %244 = dma.hbm_to_vmem [thread:$0]  %s3, 512, %s239, [#allocation9], 128, 128, 8
        $region20: #{tpu_custom_call.1} parent=11 // pred_fallthru
          _
        // Predicated region
        $region21: #{tpu_custom_call.1} parent=11 // pred_check
          %p245 = pneg %p136
        $region22: #{tpu_custom_call.1} parent=11 // pred_check_branch
          %247 = sbr.rel (%p245) target = $region24
        $region23: #{tpu_custom_call.1} parent=11 // pred_region
          _
        $region24: #{tpu_custom_call.1} parent=11 // pred_fallthru
          _
        // Predicated region
        $region25: #{tpu_custom_call.1} parent=11 // pred_check
          %p248 = pneg %p157
        $region26: #{tpu_custom_call.1} parent=11 // pred_check_branch
          %250 = sbr.rel (%p248) target = $region28
        $region27: #{tpu_custom_call.1} parent=11 // pred_region
          _
        $region28: #{tpu_custom_call.1} parent=11 // pred_fallthru
          _
        // Predicated region
        $region29: #{tpu_custom_call.1} parent=11 // pred_check
          %p251 = pneg %p178
        $region30: #{tpu_custom_call.1} parent=11 // pred_check_branch
          %253 = sbr.rel (%p251) target = $region32
        $region31: #{tpu_custom_call.1} parent=11 // pred_region
          _
        $region32: #{tpu_custom_call.1} parent=11 // pred_fallthru
          _
      $region12: #{tpu_custom_call.1} parent=5 // pred_fallthru
        _
      %p254 = scmp.lt.s32.totalorder %s21, 2
      // Predicated region
      $region33: #{tpu_custom_call.1} parent=5 // pred_check
        %p255 = pneg %p254
      $region34: #{tpu_custom_call.1} parent=5 // pred_check_branch
        %257 = sbr.rel (%p255) target = $region36
      $region35: #{tpu_custom_call.1} parent=5 // pred_region
        // Predicated region
        $region37: #{tpu_custom_call.1} parent=35 // pred_check
          %p258 = pneg %p41
        $region38: #{tpu_custom_call.1} parent=35 // pred_check_branch
          %260 = sbr.rel (%p258) target = $region40
        $region39: #{tpu_custom_call.1} parent=35 // pred_region
          %s261 = sand.u32 %s31, 1
          %s262 = scalar_lea.sflag [#allocation4], %s261
          %s263 = sand.u32 %s31, 1
          %s264 = smul.addr %s263, 8
          %s265 = scalar_lea.vmem [#allocation3], %s264
          %s267 = ssub.s32 128, 128
          %268 = vsyncadd %s262, %s267
          %s269 = smul.addr %s21, 128
          %s270 = scalar_lea.hbm %s0, %s269
          %s272 = sshll.u32 %s265, 4
          %s273 = int_to_ptr.vmem [resolvable:$true] %s272
          %275 = dma.hbm_to_vmem [thread:$0]  %s270, 128, %s273, %s262
        $region40: #{tpu_custom_call.1} parent=35 // pred_fallthru
          _
        // Predicated region
        $region41: #{tpu_custom_call.1} parent=35 // pred_check
          %p276 = pneg %p67
        $region42: #{tpu_custom_call.1} parent=35 // pred_check_branch
          %278 = sbr.rel (%p276) target = $region44
        $region43: #{tpu_custom_call.1} parent=35 // pred_region
          %s279 = sand.u32 %s21, 1
          %s280 = scalar_lea.sflag [#allocation6], %s279
          %s281 = sand.u32 %s57, 1
          %s282 = smul.addr %s281, 8
          %s283 = scalar_lea.vmem [#allocation5], %s282
          %s285 = ssub.s32 128, 128
          %286 = vsyncadd %s280, %s285
          %s287 = smul.addr %s21, 128
          %s288 = scalar_lea.hbm %s1, %s287
          %s290 = sshll.u32 %s283, 4
          %s291 = int_to_ptr.vmem [resolvable:$true] %s290
          %293 = dma.hbm_to_vmem [thread:$0]  %s288, 128, %s291, %s280
        $region44: #{tpu_custom_call.1} parent=35 // pred_fallthru
          _
      $region36: #{tpu_custom_call.1} parent=5 // pred_fallthru
        _
      %p294 = scmp.le.s32.totalorder 1, %s21
      %p295 = scmp.lt.s32.totalorder %s21, 3
      %p296 = pnand %p294, %p295
      %p297 = pneg %p296
      // Predicated region
      $region45: #{tpu_custom_call.1} parent=5 // pred_check
        _
      $region46: #{tpu_custom_call.1} parent=5 // pred_check_branch
        %299 = sbr.rel (%p296) target = $region48
      $region47: #{tpu_custom_call.1} parent=5 // pred_region
        %s300 = ssub.s32 %s21, 1
        %s301 = sand.u32 %s34, 1
        %s302 = scalar_lea.sflag [#allocation4], %s301
        %s303 = sand.u32 %s34, 1
        %s304 = smul.addr %s303, 8
        %s305 = scalar_lea.vmem [#allocation3], %s304
        // Predicated region
        $region49: #{tpu_custom_call.1} parent=47 // pred_check
          %p306 = pneg %p47
        $region50: #{tpu_custom_call.1} parent=47 // pred_check_branch
          %308 = sbr.rel (%p306) target = $region52
        $region51: #{tpu_custom_call.1} parent=47 // pred_region
          %309 = dma.done %s302, 128
        $region52: #{tpu_custom_call.1} parent=47 // pred_fallthru
          _
        %s310 = sand.u32 %s26, 1
        %s311 = scalar_lea.sflag [#allocation6], %s310
        %s312 = sand.u32 %s60, 1
        %s313 = smul.addr %s312, 8
        %s314 = scalar_lea.vmem [#allocation5], %s313
        // Predicated region
        $region53: #{tpu_custom_call.1} parent=47 // pred_check
          %p315 = pneg %p73
        $region54: #{tpu_custom_call.1} parent=47 // pred_check_branch
          %317 = sbr.rel (%p315) target = $region56
        $region55: #{tpu_custom_call.1} parent=47 // pred_region
          %318 = dma.done %s311, 128
        $region56: #{tpu_custom_call.1} parent=47 // pred_fallthru
          _
        // Predicated region
        $region57: #{tpu_custom_call.1} parent=47 // pred_check
          %p319 = pneg %p94
        $region58: #{tpu_custom_call.1} parent=47 // pred_check_branch
          %321 = sbr.rel (%p319) target = $region60
        $region59: #{tpu_custom_call.1} parent=47 // pred_region
          %322 = dma.done [#allocation6], 512
        $region60: #{tpu_custom_call.1} parent=47 // pred_fallthru
          _
        // Predicated region
        $region61: #{tpu_custom_call.1} parent=47 // pred_check
          %p323 = pneg %p115
        $region62: #{tpu_custom_call.1} parent=47 // pred_check_branch
          %325 = sbr.rel (%p323) target = $region64
        $region63: #{tpu_custom_call.1} parent=47 // pred_region
          %326 = dma.done [#allocation9], 512
        $region64: #{tpu_custom_call.1} parent=47 // pred_fallthru
          _
        %s327 = sand.u32 %s34, 1
        %s328 = scalar_lea.sflag [#allocation4], %s327
        %s329 = sand.u32 %s34, 1
        %s330 = smul.addr %s329, 8
        %s331 = scalar_lea.vmem [#allocation3], %s330
        %p332 = pneg %p47
        %p333 = pneg %p44
        %s334 = sand.u32 %s26, 1
        %s335 = scalar_lea.sflag [#allocation6], %s334
        %s336 = sand.u32 %s60, 1
        %s337 = smul.addr %s336, 8
        %s338 = scalar_lea.vmem [#allocation5], %s337
        %p339 = pneg %p73
        %p340 = pneg %p70
        %p341 = pneg %p94
        %p342 = pneg %p91
        %p343 = pneg %p115
        %p344 = pneg %p112
        %p345 = pneg %p136
        %p346 = pneg %p133
        %p347 = pneg %p157
        %p348 = pneg %p154
        %p349 = pneg %p178
        %p350 = pneg %p175
        %p351 = pneg %p204
        %p352 = pneg %p201
        %p353 = scmp.lt.s32.totalorder %s26, 1
        %s354 = scalar_select %p353, %s26, 1
        %s355 = smul.addr %s354, 8
        %s356 = scalar_lea.vmem %s7, %s355
        %p357 = scmp.lt.s32.totalorder %s26, 1
        %s358 = scalar_select %p357, %s26, 1
        %s359 = smul.addr %s358, 8
        %s360 = scalar_lea.vmem %s7, %s359
        %v361 = vld [vmem:[%s305] sm:$0xff]
        %v362 = vld [vmem:[#allocation7] sm:$0xff]
        %v363 = vld [vmem:[#allocation7 + $0x8] sm:$0xff]
        %v364 = vld [vmem:[#allocation7 + $0x10] sm:$0xff]
        %v365 = vld [vmem:[#allocation7 + $0x18] sm:$0xff]
        %v366 = vld [vmem:[%s314] sm:$0xff]
        %v367 = vld [vmem:[#allocation8] sm:$0xff]
        %v368 = vld [vmem:[#allocation8 + $0x8] sm:$0xff]
        %v369 = vld [vmem:[#allocation8 + $0x10] sm:$0xff]
        %v370 = vld [vmem:[#allocation8 + $0x18] sm:$0xff]
        %vm371 = vcmask 261120
        %v373 = vsel %vm371, %v366, 0
        %375 = vmatprep.subr.mxu0 0.0
        %376 = vmatpush1.msra.mxu0 %v367
        %377 = vmatprep.subr.mxu0 0.0
        %378 = vmatpush1.msra.mxu0 %v368
        %379 = vmatprep.subr.mxu0 0.0
        %380 = vmatpush1.msra.mxu0 %v369
        %381 = vmatprep.subr.mxu0 0.0
        %382 = vmatpush1.msra.mxu0 %v370
        %383 = vmatprep.subr.mxu0 0.0
        %384 = vmatpush1.msra.mxu0 0.0
        %385 = vmatprep.subr.mxu0 0.0
        %386 = vmatpush1.msra.mxu0 0.0
        %387 = vmatprep.subr.mxu0 0.0
        %388 = vmatpush1.msra.mxu0 0.0
        %389 = vmatprep.subr.mxu0 0.0
        %390 = vmatpush1.msra.mxu0 0.0
        %391 = vmatprep.subr.mxu0 0.0
        %392 = vmatpush1.msra.mxu0 0.0
        %393 = vmatprep.subr.mxu0 0.0
        %394 = vmatpush1.msra.mxu0 0.0
        %395 = vmatprep.subr.mxu0 0.0
        %396 = vmatpush1.msra.mxu0 0.0
        %397 = vmatprep.subr.mxu0 0.0
        %398 = vmatpush1.msra.mxu0 0.0
        %399 = vmatprep.subr.mxu0 0.0
        %400 = vmatpush1.msra.mxu0 0.0
        %401 = vmatprep.subr.mxu0 0.0
        %402 = vmatpush1.msra.mxu0 0.0
        %403 = vmatprep.subr.mxu0 0.0
        %404 = vmatpush1.msra.mxu0 0.0
        %405 = vmatprep.subr.mxu0 0.0
        %406 = vmatpush1.msra.mxu0 0.0
        %407 = vmatprep.subr.mxu0 0.0
        %408 = vmatpush1.msra.mxu0 0.0
        %409 = vmatprep.subr.mxu0 0.0
        %410 = vmatpush1.msra.mxu0 0.0
        %411 = vmatprep.subr.mxu0 0.0
        %412 = vmatpush1.msra.mxu0 0.0
        %413 = vmatprep.subr.mxu0 0.0
        %414 = vmatpush1.msra.mxu0 0.0
        %415 = vmatprep.subr.mxu0 0.0
        %416 = vmatpush1.msra.mxu0 0.0
        %417 = vmatprep.subr.mxu0 0.0
        %418 = vmatpush1.msra.mxu0 0.0
        %419 = vmatprep.subr.mxu0 0.0
        %420 = vmatpush1.msra.mxu0 0.0
        %421 = vmatprep.subr.mxu0 0.0
        %422 = vmatpush1.msra.mxu0 0.0
        %423 = vmatprep.subr.mxu0 0.0
        %424 = vmatpush1.msra.mxu0 0.0
        %425 = vmatprep.subr.mxu0 0.0
        %426 = vmatpush1.msra.mxu0 0.0
        %427 = vmatprep.subr.mxu0 0.0
        %428 = vmatpush1.msra.mxu0 0.0
        %429 = vmatprep.subr.mxu0 0.0
        %430 = vmatpush1.msra.mxu0 0.0
        %431 = vmatprep.subr.mxu0 0.0
        %432 = vmatpush1.msra.mxu0 0.0
        %433 = vmatprep.subr.mxu0 0.0
        %434 = vmatpush1.msra.mxu0 0.0
        %435 = vmatprep.subr.mxu0 0.0
        %436 = vmatpush1.msra.mxu0 0.0
        %437 = vmatprep.subr.mxu0 0.0
        %438 = vmatpush1.msra.mxu0 0.0
        %439 = vmatprep.mubr.f32.mxu0 0.0
        %440 = vmatmul.mubr.f32.gmra.mrb[0].mxu0 %v373
        %v441 = vpop.f32.mrb[0].mxu0
        %v442 = vadd.f32 0.0, %v441
        %v443 = vpop.f32.mrb[0].mxu0
        %444 = vdwg.mxu0
        %v446 = vsel %vm371, %v361, 0
        %448 = vmatprep.subr.mxu0 0.0
        %449 = vmatpush1.msra.mxu0 %v362
        %450 = vmatprep.subr.mxu0 0.0
        %451 = vmatpush1.msra.mxu0 %v363
        %452 = vmatprep.subr.mxu0 0.0
        %453 = vmatpush1.msra.mxu0 %v364
        %454 = vmatprep.subr.mxu0 0.0
        %455 = vmatpush1.msra.mxu0 %v365
        %456 = vmatprep.subr.mxu0 0.0
        %457 = vmatpush1.msra.mxu0 0.0
        %458 = vmatprep.subr.mxu0 0.0
        %459 = vmatpush1.msra.mxu0 0.0
        %460 = vmatprep.subr.mxu0 0.0
        %461 = vmatpush1.msra.mxu0 0.0
        %462 = vmatprep.subr.mxu0 0.0
        %463 = vmatpush1.msra.mxu0 0.0
        %464 = vmatprep.subr.mxu0 0.0
        %465 = vmatpush1.msra.mxu0 0.0
        %466 = vmatprep.subr.mxu0 0.0
        %467 = vmatpush1.msra.mxu0 0.0
        %468 = vmatprep.subr.mxu0 0.0
        %469 = vmatpush1.msra.mxu0 0.0
        %470 = vmatprep.subr.mxu0 0.0
        %471 = vmatpush1.msra.mxu0 0.0
        %472 = vmatprep.subr.mxu0 0.0
        %473 = vmatpush1.msra.mxu0 0.0
        %474 = vmatprep.subr.mxu0 0.0
        %475 = vmatpush1.msra.mxu0 0.0
        %476 = vmatprep.subr.mxu0 0.0
        %477 = vmatpush1.msra.mxu0 0.0
        %478 = vmatprep.subr.mxu0 0.0
        %479 = vmatpush1.msra.mxu0 0.0
        %480 = vmatprep.subr.mxu0 0.0
        %481 = vmatpush1.msra.mxu0 0.0
        %482 = vmatprep.subr.mxu0 0.0
        %483 = vmatpush1.msra.mxu0 0.0
        %484 = vmatprep.subr.mxu0 0.0
        %485 = vmatpush1.msra.mxu0 0.0
        %486 = vmatprep.subr.mxu0 0.0
        %487 = vmatpush1.msra.mxu0 0.0
        %488 = vmatprep.subr.mxu0 0.0
        %489 = vmatpush1.msra.mxu0 0.0
        %490 = vmatprep.subr.mxu0 0.0
        %491 = vmatpush1.msra.mxu0 0.0
        %492 = vmatprep.subr.mxu0 0.0
        %493 = vmatpush1.msra.mxu0 0.0
        %494 = vmatprep.subr.mxu0 0.0
        %495 = vmatpush1.msra.mxu0 0.0
        %496 = vmatprep.subr.mxu0 0.0
        %497 = vmatpush1.msra.mxu0 0.0
        %498 = vmatprep.subr.mxu0 0.0
        %499 = vmatpush1.msra.mxu0 0.0
        %500 = vmatprep.subr.mxu0 0.0
        %501 = vmatpush1.msra.mxu0 0.0
        %502 = vmatprep.subr.mxu0 0.0
        %503 = vmatpush1.msra.mxu0 0.0
        %504 = vmatprep.subr.mxu0 0.0
        %505 = vmatpush1.msra.mxu0 0.0
        %506 = vmatprep.subr.mxu0 0.0
        %507 = vmatpush1.msra.mxu0 0.0
        %508 = vmatprep.subr.mxu0 0.0
        %509 = vmatpush1.msra.mxu0 0.0
        %510 = vmatprep.subr.mxu0 0.0
        %511 = vmatpush1.msra.mxu0 0.0
        %512 = vmatprep.mubr.f32.mxu0 0.0
        %513 = vmatmul.mubr.f32.gmra.mrb[0].mxu0 %v446
        %v514 = vpop.f32.mrb[0].mxu0
        %v515 = vadd.f32 %v442, %v514
        %v516 = vpop.f32.mrb[0].mxu0
        %517 = vdwg.mxu0
        %v518 = vld [vmem:[%s4] sm:$0x1]
        %v520 = vlaneseq
        %v521 = vshrl.u32 %v520, 7
        %v522 = vsub.s32 0, %v521
        %v523 = vrot.slane %v518, %v522
        %v525 = vadd.f32 %v515, %v523
        %v526 = vmax.f32 %v525, 0.0
        %v527 = vld [vmem:[%s5] sm:$0x1]
        %v529 = vlaneseq
        %v530 = vshrl.u32 %v529, 7
        %v531 = vsub.s32 0, %v530
        %v532 = vrot.slane %v527, %v531
        %v534 = vmul.f32 %v526, %v532
        %v535 = vsel %vm371, %v534, 0.0
        %536 = vadd.xlane.f32.xlu0 %v535
        %v537 = vpop.xlane.xlu0 %536
        %s538 = sld [smem:[#allocation2]]
        %v539 = vstv %s538
        %v540 = vadd.f32 %v537, %v539
        %v541 = vxor.u32 %v540, 2147483648
        %v542 = vmul.f32 %v541, 1.442695
        %v543 = vpow.pop %v542
        %v544 = vadd.f32 %v543, 1.0
        %v545 = vrcp.pop %v544
        %v546 = vmul.f32 1.0, %v545
        %vm547 = vcmask 7168
        %548 = vst.msk [vmem:[%s360] sm:$0xff] %vm547, %v546
        %p549 = scmp.lt.s32.totalorder %s26, 1
        %s550 = scalar_select %p549, %s26, 1
        %s551 = smul.addr %s550, 8
        %s552 = scalar_lea.vmem %s7, %s551
        // Predicated region
        $region65: #{tpu_custom_call.1} parent=47 // pred_check
          %p553 = pneg %p201
        $region66: #{tpu_custom_call.1} parent=47 // pred_check_branch
          %555 = sbr.rel (%p553) target = $region68
        $region67: #{tpu_custom_call.1} parent=47 // pred_region
          _
        $region68: #{tpu_custom_call.1} parent=47 // pred_fallthru
          _
      $region48: #{tpu_custom_call.1} parent=5 // pred_fallthru
        _
      %p556 = scmp.le.s32.totalorder 2, %s21
      // Predicated region
      $region69: #{tpu_custom_call.1} parent=5 // pred_check
        %p557 = pneg %p556
      $region70: #{tpu_custom_call.1} parent=5 // pred_check_branch
        %559 = sbr.rel (%p557) target = $region72
      $region71: #{tpu_custom_call.1} parent=5 // pred_region
        %s560 = ssub.s32 %s21, 2
        // Predicated region
        $region73: #{tpu_custom_call.1} parent=71 // pred_check
          %p561 = pneg %p207
        $region74: #{tpu_custom_call.1} parent=71 // pred_check_branch
          %563 = sbr.rel (%p561) target = $region76
        $region75: #{tpu_custom_call.1} parent=71 // pred_region
          %p564 = scmp.lt.s32.totalorder %s27, 1
          %s565 = scalar_select %p564, %s27, 1
          %s566 = smul.addr %s565, 8
          %s567 = scalar_lea.vmem %s7, %s566
        $region76: #{tpu_custom_call.1} parent=71 // pred_fallthru
          _
      $region72: #{tpu_custom_call.1} parent=5 // pred_fallthru
        _
    $region6: #{tpu_custom_call.1} parent=1 // loop_footer
      %s25 = sadd.s32 1, %s21
    $region7: #{tpu_custom_call.1} parent=1 // loop_footer_branch
      %20 = sbr.rel target = $region3
    $region8: #{tpu_custom_call.1} parent=1 // loop_exit
      _
    %568 = vsyncpa [#allocation4], 1
    %s569 = scalar_lea.sflag [#allocation4], 1
    %570 = vsyncpa %s569, 1
    %571 = vsyncpa [#allocation6], 1
    %s572 = scalar_lea.sflag [#allocation6], 1
    %573 = vsyncpa %s572, 1
    %574 = vsyncpa [#allocation9], 1

</llo_original>
